<compile_context>
chip_gen: v7x
topology: tpu7x:2x2x1
jax: 0.10.0
libtpu: 0.0.40
codegen_flags: <defaults>
</compile_context>

<pallas_src>
import collections

import jax
import jax.numpy as jnp
from jax.experimental import pallas as pl
from jax.experimental.pallas import tpu as pltpu

VerifierOutputs = collections.namedtuple("VerifierOutputs", ["scores"])

_TM_MAX = 512  # tokens per grid step (multiple of 256; sweep 512-2048 at scale)


def _verifier_fused_kernel(ids_ref, m_t_ref, b1_ref, w2_ref, b2_ref, o_ref):
    """Fused embedding(+folded W1) gather + score head for one tile of tokens.

    ids_ref : [1, 1, TM] int32   token ids for this tile
    m_t_ref : [H, V]     bf16    (E @ W1)^T, VMEM-resident across grid steps
    b1_ref  : [H, 1]     f32     layer-1 bias as a column (VMEM-resident)
    w2_ref  : [H, 1]     f32     score-head weights as a column (VMEM-resident)
    b2_ref  : [1, 1]     f32     score-head bias (SMEM scalar)
    o_ref   : [1, 1, TM] f32     scores for this tile (lane-dense store)
    """
    ids = ids_ref[0]                                   # [1, TM] int32
    vocab = m_t_ref.shape[1]
    tm = ids.shape[-1]

    # Embedding(+W1) gather as a one-hot matmul on the MXU:
    #   onehot_t[v, t] = (v == ids[t]);   h_t = M^T @ onehot_t -> [H, TM] f32.
    vocab_iota = jax.lax.broadcasted_iota(jnp.int32, (vocab, tm), 0)
    onehot_t = (vocab_iota == ids).astype(m_t_ref.dtype)           # [V, TM] bf16
    h_t = jnp.dot(m_t_ref[...], onehot_t,
                  preferred_element_type=jnp.float32)              # [H, TM] f32

    # relu(h + b1), then score head s[t] = sum_j z[j, t] * w2[j] + b2.
    # VPU multiply + sublane reduction (XLU) instead of a 1-wide MXU pass.
    z_t = jnp.maximum(h_t + b1_ref[...], 0.0)                      # [H, TM] f32
    s = jnp.sum(z_t * w2_ref[...], axis=0, keepdims=True)          # [1, TM] f32
    s = s + b2_ref[0, 0]
    o_ref[...] = s[None]                                           # [1, 1, TM]


def _resident(shape):
    """BlockSpec for a small parameter kept resident across all grid steps."""
    return pl.BlockSpec(shape, lambda i: (0,) * len(shape))


def verifier_scores(ids3, m_t, b1_col, w2_col, b2):
    """ids3: [G, 1, TM] int32 -> scores slab [G, 1, TM] f32."""
    g, _, tm = ids3.shape
    h_dim, vocab = m_t.shape
    return pl.pallas_call(
        _verifier_fused_kernel,
        out_shape=jax.ShapeDtypeStruct((g, 1, tm), jnp.float32),
        grid=(g,),
        in_specs=[
            pl.BlockSpec((1, 1, tm), lambda i: (i, 0, 0)),   # token ids tile
            _resident((h_dim, vocab)),                        # (E@W1)^T  bf16
            _resident((h_dim, 1)),                            # b1 column f32
            _resident((h_dim, 1)),                            # w2 column f32
            pl.BlockSpec(memory_space=pltpu.SMEM),            # b2 scalar
        ],
        out_specs=pl.BlockSpec((1, 1, tm), lambda i: (i, 0, 0)),
        compiler_params=pltpu.CompilerParams(
            dimension_semantics=("parallel",),
            vmem_limit_bytes=32 * 1024 * 1024),
    )(ids3, m_t, b1_col, w2_col, b2)


def _pick_tm(n_tokens: int) -> int:
    """Tokens per grid step: multiple of 256 (full v6e/v7x MXU width), <= _TM_MAX."""
    tm = -(-n_tokens // 256) * 256
    return max(256, min(tm, _TM_MAX))


class VerifierJAX:
    """JAX/Pallas port of the (abstract) PyTorch Verifier."""

    def __init__(self, vocab_size: int = 64, hidden: int = 32, key=None):
        if key is None:
            key = jax.random.PRNGKey(0)
        k_emb, k_w1, k_w2, k_b1, k_b2 = jax.random.split(key, 5)
        scale = 1.0 / jnp.sqrt(hidden)
        emb = jax.random.normal(k_emb, (vocab_size, hidden), jnp.float32) * scale
        w1 = jax.random.normal(k_w1, (hidden, hidden), jnp.float32) * scale
        w2 = jax.random.normal(k_w2, (hidden, 1), jnp.float32) * scale

        # bf16 quantized parameters (f32 accumulation in the kernel).
        self.embedding = emb.astype(jnp.bfloat16)                  # [V, H]
        self.w1 = w1.astype(jnp.bfloat16)                          # [H, H]

        # Fold W1 into the embedding table: M = E @ W1 (single bf16 quantization),
        # stored transposed so the token axis sits on lanes inside the kernel.
        m = (self.embedding.astype(jnp.float32)
             @ self.w1.astype(jnp.float32)).astype(jnp.bfloat16)   # [V, H]
        self.m = m
        self.m_t = jnp.asarray(m.T)                                # [H, V] bf16

        self.b1_col = jax.random.normal(k_b1, (hidden, 1), jnp.float32) * 0.1
        self.w2_col = w2.astype(jnp.float32)                       # [H, 1]
        self.b2 = jax.random.normal(k_b2, (1, 1), jnp.float32) * 0.1
        self.hidden = hidden
        self.vocab_size = vocab_size

    def forward(self, tokens: jnp.ndarray) -> VerifierOutputs:
        b, s = tokens.shape
        n = b * s
        tm = _pick_tm(n)
        g = -(-n // tm)                      # ceil(n / tm)
        if g > 1 and g % 2:
            g += 1                           # even step count -> balanced v7x megacore
        pad = g * tm - n
        ids = tokens.reshape(-1).astype(jnp.int32)
        ids = jnp.pad(ids, (0, pad))         # pad with id 0; padded lanes sliced off
        ids3 = ids.reshape(g, 1, tm)

        slab = verifier_scores(ids3, self.m_t, self.b1_col,
                               self.w2_col, self.b2)               # [G, 1, TM]
        scores = slab.reshape(g * tm)[:n].reshape(b, s)            # [B, S] f32
        return VerifierOutputs(scores=scores)

    def reference_scores(self, tokens: jnp.ndarray) -> jnp.ndarray:
        """Pure-JAX reference of the same (folded, bf16-quantized) head."""
        b, s = tokens.shape
        m_f = self.m.astype(jnp.float32)                           # [V, H]
        h = m_f[tokens.reshape(-1)]                                # [N, H]
        z = jnp.maximum(h + self.b1_col.T, 0.0)                    # [N, H]
        return (z @ self.w2_col + self.b2[0, 0]).reshape(b, s)     # [B, S]


if __name__ == "__main__":
    key = jax.random.PRNGKey(0)
    tok_key, tok_key2, param_key = jax.random.split(key, 3)

    vocab, hidden = 64, 32
    model = VerifierJAX(vocab_size=vocab, hidden=hidden, key=param_key)

    # Small shape implied by the module interface: tokens [B, S] -> scores [B, S].
    batch, seq = 2, 8
    tokens = jax.random.randint(tok_key, (batch, seq), 0, vocab, dtype=jnp.int32)
    out = model.forward(tokens)
    scores = jax.block_until_ready(out.scores)
    ref = model.reference_scores(tokens)
    assert scores.shape == (batch, seq)
    assert scores.dtype == jnp.float32
    assert jnp.allclose(scores, ref, atol=1e-3, rtol=1e-3)

    # Larger run exercising the multi-step grid (g >= 2, even) at TM=512.
    batch2, seq2 = 8, 256
    tokens2 = jax.random.randint(tok_key2, (batch2, seq2), 0, vocab, dtype=jnp.int32)
    out2 = model.forward(tokens2)
    scores2 = jax.block_until_ready(out2.scores)
    ref2 = model.reference_scores(tokens2)
    assert scores2.shape == (batch2, seq2)
    assert jnp.allclose(scores2, ref2, atol=1e-3, rtol=1e-3)

    print("KERNEL_OK")
</pallas_src>

<mosaic_0001>
module attributes {stable_mosaic.version = 11 : i64} {
  func.func @_verifier_fused_kernel(%arg0: i32, %arg1: memref<1x1x256xi32, #tpu.memory_space<vmem>>, %arg2: memref<32x64xbf16, #tpu.memory_space<vmem>>, %arg3: memref<32x1xf32, #tpu.memory_space<vmem>>, %arg4: memref<32x1xf32, #tpu.memory_space<vmem>>, %arg5: memref<1x1xf32, #tpu.memory_space<smem>>, %arg6: memref<1x1x256xf32, #tpu.memory_space<vmem>>) attributes {dimension_semantics = [#tpu.dimension_semantics<parallel>], iteration_bounds = array<i64: 1>, scalar_prefetch = 0 : i64, scratch_operands = 0 : i64, tpu.core_type = #tpu.core_type<tc>, window_params = [{transform_indices = @transform_0, window_bounds = array<i64: 1, 1, 256>}, {pipeline_mode = #tpu.pipeline_mode<synchronous>, transform_indices = @transform_1, window_bounds = array<i64: 32, 64>}, {pipeline_mode = #tpu.pipeline_mode<synchronous>, transform_indices = @transform_2, window_bounds = array<i64: 32, 1>}, {pipeline_mode = #tpu.pipeline_mode<synchronous>, transform_indices = @transform_3, window_bounds = array<i64: 32, 1>}, {transform_indices = @transform_4, window_bounds = array<i64: 1, 1>}, {transform_indices = @transform_5, window_bounds = array<i64: 1, 1, 256>}]} {
    %c0 = arith.constant 0 : index
    %c0_0 = arith.constant 0 : index
    %c0_1 = arith.constant 0 : index
    %0 = vector.load %arg1[%c0, %c0_0, %c0_1] : memref<1x1x256xi32, #tpu.memory_space<vmem>>, vector<1x1x256xi32>
    %1 = vector.shape_cast %0 : vector<1x1x256xi32> to vector<1x256xi32>
    %2 = tpu.iota {dimensions = array<i32: 0>} : vector<64x256xi32>
    %3 = vector.broadcast %1 : vector<1x256xi32> to vector<64x256xi32>
    %4 = arith.cmpi eq, %2, %3 : vector<64x256xi32>
    %5 = arith.extui %4 : vector<64x256xi1> to vector<64x256xi32>
    %6 = arith.sitofp %5 : vector<64x256xi32> to vector<64x256xf32>
    %7 = arith.truncf %6 : vector<64x256xf32> to vector<64x256xbf16>
    %c0_2 = arith.constant 0 : index
    %c0_3 = arith.constant 0 : index
    %8 = vector.load %arg2[%c0_2, %c0_3] : memref<32x64xbf16, #tpu.memory_space<vmem>>, vector<32x64xbf16>
    %cst = arith.constant dense<0.000000e+00> : vector<32x256xf32>
    %9 = tpu.matmul %8, %7, %cst {dimension_numbers = #tpu.dot_dimension_numbers<[1], [0], [0], [1], [0, 0, 1, 1], [], []>} : vector<32x64xbf16>, vector<64x256xbf16>, vector<32x256xf32> -> vector<32x256xf32>
    %c0_4 = arith.constant 0 : index
    %c0_5 = arith.constant 0 : index
    %10 = vector.load %arg3[%c0_4, %c0_5] : memref<32x1xf32, #tpu.memory_space<vmem>>, vector<32x1xf32>
    %11 = vector.broadcast %10 : vector<32x1xf32> to vector<32x256xf32>
    %12 = arith.addf %9, %11 : vector<32x256xf32>
    %cst_6 = arith.constant 0.000000e+00 : f32
    %13 = vector.broadcast %cst_6 : f32 to vector<32x256xf32>
    %14 = arith.maximumf %12, %13 : vector<32x256xf32>
    %c0_7 = arith.constant 0 : index
    %c0_8 = arith.constant 0 : index
    %15 = vector.load %arg4[%c0_7, %c0_8] : memref<32x1xf32, #tpu.memory_space<vmem>>, vector<32x1xf32>
    %16 = vector.broadcast %15 : vector<32x1xf32> to vector<32x256xf32>
    %17 = arith.mulf %14, %16 : vector<32x256xf32>
    %cst_9 = arith.constant dense<0.000000e+00> : vector<256xf32>
    %18 = vector.multi_reduction <add>, %17, %cst_9 [0] : vector<32x256xf32> to vector<256xf32>
    %19 = vector.shape_cast %18 : vector<256xf32> to vector<1x256xf32>
    %c0_10 = arith.constant 0 : index
    %c0_11 = arith.constant 0 : index
    %20 = memref.load %arg5[%c0_10, %c0_11] : memref<1x1xf32, #tpu.memory_space<smem>>
    %21 = vector.broadcast %20 : f32 to vector<1x256xf32>
    %22 = arith.addf %19, %21 : vector<1x256xf32>
    %23 = vector.shape_cast %22 : vector<1x256xf32> to vector<1x1x256xf32>
    %c0_12 = arith.constant 0 : index
    %c0_13 = arith.constant 0 : index
    %c0_14 = arith.constant 0 : index
    %24 = vector.load %arg6[%c0_12, %c0_13, %c0_14] : memref<1x1x256xf32, #tpu.memory_space<vmem>>, vector<1x1x256xf32>
    tpu.vector_store %arg6[%c0_12, %c0_13, %c0_14], %23 {strides = array<i32>} : memref<1x1x256xf32, #tpu.memory_space<vmem>>, vector<1x1x256xf32>,
    return
  }
  func.func @transform_0(%arg0: i32) -> (i32, i32, i32) {
    %c0_i32 = arith.constant 0 : i32
    %c0_i32_0 = arith.constant 0 : i32
    %c0_i32_1 = arith.constant 0 : i32
    return %arg0, %c0_i32, %c0_i32_0 : i32, i32, i32
  }
  func.func @transform_1(%arg0: i32) -> (i32, i32) {
    %c0_i32 = arith.constant 0 : i32
    %c0_i32_0 = arith.constant 0 : i32
    %c0_i32_1 = arith.constant 0 : i32
    return %c0_i32, %c0_i32_0 : i32, i32
  }
  func.func @transform_2(%arg0: i32) -> (i32, i32) {
    %c0_i32 = arith.constant 0 : i32
    %c0_i32_0 = arith.constant 0 : i32
    %c0_i32_1 = arith.constant 0 : i32
    return %c0_i32, %c0_i32_0 : i32, i32
  }
  func.func @transform_3(%arg0: i32) -> (i32, i32) {
    %c0_i32 = arith.constant 0 : i32
    %c0_i32_0 = arith.constant 0 : i32
    %c0_i32_1 = arith.constant 0 : i32
    return %c0_i32, %c0_i32_0 : i32, i32
  }
  func.func @transform_4(%arg0: i32) -> (i32, i32) {
    %c0_i32 = arith.constant 0 : i32
    %c0_i32_0 = arith.constant 0 : i32
    %c0_i32_1 = arith.constant 0 : i32
    return %c0_i32, %c0_i32_0 : i32, i32
  }
  func.func @transform_5(%arg0: i32) -> (i32, i32, i32) {
    %c0_i32 = arith.constant 0 : i32
    %c0_i32_0 = arith.constant 0 : i32
    %c0_i32_1 = arith.constant 0 : i32
    return %arg0, %c0_i32, %c0_i32_0 : i32, i32, i32
  }
}

</mosaic_0001>

<llo_original>
// kernel: tpu_custom_call.1
$region0: #{tpu_custom_call.1}
  #allocation0 [shape = 'u32[]', space=smem, size = 0x4, offset = 0x4, fixed_abs, tag = 'smem constant byte address 0x4 - core index']
  #allocation1 [shape = 'u32[144,128]{1,0:T(1,128)}', space=vmem, size = 0x12000, scoped, tag = 'internal scratch']
  #allocation2 [shape = 'f32[1,1]{1,0:T(1,128)S(6)}', space=smem, size = 0x200, scoped, tag = 'scoped memory for tpu_custom_call.1']
  %s0 = inlined_call_operand.vmem [shape: s32[1,1,256], index: 0, kind: input, shape index: {}]
  %s1 = inlined_call_operand.vmem [shape: bf16[32,64], index: 1, kind: input, shape index: {}]
  %s2 = inlined_call_operand.vmem [shape: f32[32,1], index: 2, kind: input, shape index: {}]
  %s3 = inlined_call_operand.vmem [shape: f32[32,1], index: 3, kind: input, shape index: {}]
  %s4 = inlined_call_operand.<no memory space> [shape: f32[1,1], index: 4, kind: input, shape index: {}]
  %s5 = inlined_call_operand.hbm [shape: f32[1,1,256], index: 5, kind: output, shape index: {}]
  %s6 = sld [smem:[#allocation0]]
  $region30: #{tpu_custom_call.1} parent=0
    _
  %s8 = ssub.s32 1, %s6
  %s9 = scalar_select 0, %s8, %s6
  %10 = sst [smem:[#allocation2]] %s4
  $region1: #{tpu_custom_call.1} parent=0
    #allocation3 [shape = 'u8[1024]{0}', space=vmem, size = 0x400, scoped, tag = 'output window, operand 0, single buffered']
    #allocation4 [shape = 's32[1]{0}', space=sflag, size = 0x4, scoped, tag = 'scoped memory for tpu_custom_call.1']
    %11 = vsyncpa [#allocation4], 0
    // Predicated region
    $region2: #{tpu_custom_call.1} parent=1 // pred_check
      _
    $region3: #{tpu_custom_call.1} parent=1 // pred_check_branch
      %13 = sbr.rel (0) target = $region5
    $region4: #{tpu_custom_call.1} parent=1 // pred_region
      _
    $region5: #{tpu_custom_call.1} parent=1 // pred_fallthru
      _
    // Predicated region
    $region6: #{tpu_custom_call.1} parent=1 // pred_check
      _
    $region7: #{tpu_custom_call.1} parent=1 // pred_check_branch
      %15 = sbr.rel (0) target = $region9
    $region8: #{tpu_custom_call.1} parent=1 // pred_region
      _
    $region9: #{tpu_custom_call.1} parent=1 // pred_fallthru
      _
    // Predicated region
    $region10: #{tpu_custom_call.1} parent=1 // pred_check
      _
    $region11: #{tpu_custom_call.1} parent=1 // pred_check_branch
      %17 = sbr.rel (0) target = $region13
    $region12: #{tpu_custom_call.1} parent=1 // pred_region
      _
    $region13: #{tpu_custom_call.1} parent=1 // pred_fallthru
      _
    // Predicated region
    $region14: #{tpu_custom_call.1} parent=1 // pred_check
      _
    $region15: #{tpu_custom_call.1} parent=1 // pred_check_branch
      %19 = sbr.rel (0) target = $region17
    $region16: #{tpu_custom_call.1} parent=1 // pred_region
      _
    $region17: #{tpu_custom_call.1} parent=1 // pred_fallthru
      _
    // Predicated region
    $region18: #{tpu_custom_call.1} parent=1 // pred_check
      _
    $region19: #{tpu_custom_call.1} parent=1 // pred_check_branch
      %21 = sbr.rel (0) target = $region21
    $region20: #{tpu_custom_call.1} parent=1 // pred_region
      _
    $region21: #{tpu_custom_call.1} parent=1 // pred_fallthru
      _
    %v23 = vld [vmem:[%s0] sm:$0x3]
    %v24 = vlaneseq
    %v25 = vshrl.u32 %v24, 7
    %v26 = vadd.s32 %v25, 8
    %v27 = vadd.s32 %v25, 16
    %v28 = vadd.s32 %v25, 24
    %v29 = vadd.s32 %v25, 32
    %v30 = vadd.s32 %v25, 40
    %v31 = vadd.s32 %v25, 48
    %v32 = vadd.s32 %v25, 56
    %v33 = vlaneseq
    %v34 = vshrl.u32 %v33, 7
    %v35 = vsub.s32 0, %v34
    %v36 = vrot.slane %v23, %v35
    %v37 = vlaneseq
    %v38 = vshrl.u32 %v37, 7
    %v39 = vsub.s32 1, %v38
    %v40 = vrot.slane %v23, %v39
    %vm41 = vcmp.eq.s32.totalorder %v25, %v36
    %vm42 = vcmp.eq.s32.totalorder %v25, %v40
    %vm43 = vcmp.eq.s32.totalorder %v26, %v36
    %vm44 = vcmp.eq.s32.totalorder %v26, %v40
    %vm45 = vcmp.eq.s32.totalorder %v27, %v36
    %vm46 = vcmp.eq.s32.totalorder %v27, %v40
    %vm47 = vcmp.eq.s32.totalorder %v28, %v36
    %vm48 = vcmp.eq.s32.totalorder %v28, %v40
    %vm49 = vcmp.eq.s32.totalorder %v29, %v36
    %vm50 = vcmp.eq.s32.totalorder %v29, %v40
    %vm51 = vcmp.eq.s32.totalorder %v30, %v36
    %vm52 = vcmp.eq.s32.totalorder %v30, %v40
    %vm53 = vcmp.eq.s32.totalorder %v31, %v36
    %vm54 = vcmp.eq.s32.totalorder %v31, %v40
    %vm55 = vcmp.eq.s32.totalorder %v32, %v36
    %vm56 = vcmp.eq.s32.totalorder %v32, %v40
    %v57 = vsel %vm41, 1, 0
    %v58 = vsel %vm42, 1, 0
    %v59 = vsel %vm43, 1, 0
    %v60 = vsel %vm44, 1, 0
    %v61 = vsel %vm45, 1, 0
    %v62 = vsel %vm46, 1, 0
    %v63 = vsel %vm47, 1, 0
    %v64 = vsel %vm48, 1, 0
    %v65 = vsel %vm49, 1, 0
    %v66 = vsel %vm50, 1, 0
    %v67 = vsel %vm51, 1, 0
    %v68 = vsel %vm52, 1, 0
    %v69 = vsel %vm53, 1, 0
    %v70 = vsel %vm54, 1, 0
    %v71 = vsel %vm55, 1, 0
    %v72 = vsel %vm56, 1, 0
    %v73 = vcvt.s32.f32 %v57
    %v74 = vcvt.s32.f32 %v58
    %v75 = vcvt.s32.f32 %v59
    %v76 = vcvt.s32.f32 %v60
    %v77 = vcvt.s32.f32 %v61
    %v78 = vcvt.s32.f32 %v62
    %v79 = vcvt.s32.f32 %v63
    %v80 = vcvt.s32.f32 %v64
    %v81 = vcvt.s32.f32 %v65
    %v82 = vcvt.s32.f32 %v66
    %v83 = vcvt.s32.f32 %v67
    %v84 = vcvt.s32.f32 %v68
    %v85 = vcvt.s32.f32 %v69
    %v86 = vcvt.s32.f32 %v70
    %v87 = vcvt.s32.f32 %v71
    %v88 = vcvt.s32.f32 %v72
    %v89 = vpack.c.bf16 %v75, %v73
    %v90 = vpack.c.bf16 %v76, %v74
    %v91 = vpack.c.bf16 %v79, %v77
    %v92 = vpack.c.bf16 %v80, %v78
    %v93 = vpack.c.bf16 %v83, %v81
    %v94 = vpack.c.bf16 %v84, %v82
    %v95 = vpack.c.bf16 %v87, %v85
    %v96 = vpack.c.bf16 %v88, %v86
    %v97 = vld [vmem:[%s1] sm:$0xf]
    %v98 = vld [vmem:[%s1 + $0x4] sm:$0xf]
    %v99 = vld [vmem:[%s1 + $0x8] sm:$0xf]
    %v100 = vld [vmem:[%s1 + $0xc] sm:$0xf]
    %v101 = vld [vmem:[%s2] sm:$0xff]
    %v102 = vld [vmem:[%s2 + $0x8] sm:$0xff]
    %v103 = vld [vmem:[%s2 + $0x10] sm:$0xff]
    %v104 = vld [vmem:[%s2 + $0x18] sm:$0xff]
    %106 = vset.pattern.permute.xlu0 0
    %107 = vperm.xlu0 %106, %v101
    %v108 = vpop.permute.xlu0 %107
    %111 = vset.pattern.permute.xlu0 0
    %112 = vperm.xlu0 %111, %v102
    %v113 = vpop.permute.xlu0 %112
    %116 = vset.pattern.permute.xlu0 0
    %117 = vperm.xlu0 %116, %v103
    %v118 = vpop.permute.xlu0 %117
    %121 = vset.pattern.permute.xlu0 0
    %122 = vperm.xlu0 %121, %v104
    %v123 = vpop.permute.xlu0 %122
    %v129 = vunpack.c.l.b16 %v97
    %v130 = vunpack.c.l.b16 %v98
    %v131 = vunpack.c.l.b16 %v99
    %v132 = vunpack.c.l.b16 %v100
    %v133 = vpack.c.b16 %v130, %v129
    %v134 = vpack.c.b16 %v132, %v131
    %vm135 = vcmask 523264
    %v137 = vsel %vm135, %v133, 0
    %v140 = vsel %vm135, %v134, 0
    %142 = vmatprep.subr.bf16.mxu0 %v90
    %143 = vmatpush1.bf16.msra.mxu0 %v89
    %144 = vmatprep.subr.bf16.mxu0 %v92
    %145 = vmatpush1.bf16.msra.mxu0 %v91
    %146 = vmatprep.subr.bf16.mxu0 %v94
    %147 = vmatpush1.bf16.msra.mxu0 %v93
    %148 = vmatprep.subr.bf16.mxu0 %v96
    %149 = vmatpush1.bf16.msra.mxu0 %v95
    %150 = vmatprep.subr.bf16.mxu0 0
    %151 = vmatpush1.bf16.msra.mxu0 0
    %152 = vmatprep.subr.bf16.mxu0 0
    %153 = vmatpush1.bf16.msra.mxu0 0
    %154 = vmatprep.subr.bf16.mxu0 0
    %155 = vmatpush1.bf16.msra.mxu0 0
    %156 = vmatprep.subr.bf16.mxu0 0
    %157 = vmatpush1.bf16.msra.mxu0 0
    %158 = vmatprep.subr.bf16.mxu0 0
    %159 = vmatpush1.bf16.msra.mxu0 0
    %160 = vmatprep.subr.bf16.mxu0 0
    %161 = vmatpush1.bf16.msra.mxu0 0
    %162 = vmatprep.subr.bf16.mxu0 0
    %163 = vmatpush1.bf16.msra.mxu0 0
    %164 = vmatprep.subr.bf16.mxu0 0
    %165 = vmatpush1.bf16.msra.mxu0 0
    %166 = vmatprep.subr.bf16.mxu0 0
    %167 = vmatpush1.bf16.msra.mxu0 0
    %168 = vmatprep.subr.bf16.mxu0 0
    %169 = vmatpush1.bf16.msra.mxu0 0
    %170 = vmatprep.subr.bf16.mxu0 0
    %171 = vmatpush1.bf16.msra.mxu0 0
    %172 = vmatprep.subr.bf16.mxu0 0
    %173 = vmatpush1.bf16.msra.mxu0 0
    %174 = vmatprep.mubr.bf16.mxu0 0
    %175 = vmatmul.mubr.bf16.gmra.mrb[0].mxu0 %v137
    %v176 = vpop.f32.mrb[0].mxu0
    %v177 = vadd.f32 %v108, %v176
    %v178 = vpop.f32.mrb[0].mxu0
    %v179 = vadd.f32 %v108, %v178
    %v180 = vpop.f32.mrb[0].mxu0
    %v181 = vadd.f32 %v113, %v180
    %v182 = vpop.f32.mrb[0].mxu0
    %v183 = vadd.f32 %v113, %v182
    %184 = vmatprep.mubr.bf16.mxu0 0
    %185 = vmatmul.mubr.bf16.gmra.mrb[0].mxu0 %v140
    %v186 = vpop.f32.mrb[0].mxu0
    %v187 = vadd.f32 %v118, %v186
    %v188 = vpop.f32.mrb[0].mxu0
    %v189 = vadd.f32 %v118, %v188
    %v190 = vpop.f32.mrb[0].mxu0
    %v191 = vadd.f32 %v123, %v190
    %v192 = vpop.f32.mrb[0].mxu0
    %v193 = vadd.f32 %v123, %v192
    %194 = vdwg.mxu0
    %v195 = vmax.f32 %v177, 0.0
    %v196 = vmax.f32 %v179, 0.0
    %v197 = vmax.f32 %v181, 0.0
    %v198 = vmax.f32 %v183, 0.0
    %v199 = vmax.f32 %v187, 0.0
    %v200 = vmax.f32 %v189, 0.0
    %v201 = vmax.f32 %v191, 0.0
    %v202 = vmax.f32 %v193, 0.0
    %v203 = vld [vmem:[%s3] sm:$0xff]
    %v204 = vld [vmem:[%s3 + $0x8] sm:$0xff]
    %v205 = vld [vmem:[%s3 + $0x10] sm:$0xff]
    %v206 = vld [vmem:[%s3 + $0x18] sm:$0xff]
    %208 = vset.pattern.permute.xlu0 0
    %209 = vperm.xlu0 %208, %v203
    %v210 = vpop.permute.xlu0 %209
    %213 = vset.pattern.permute.xlu0 0
    %214 = vperm.xlu0 %213, %v204
    %v215 = vpop.permute.xlu0 %214
    %218 = vset.pattern.permute.xlu0 0
    %219 = vperm.xlu0 %218, %v205
    %v220 = vpop.permute.xlu0 %219
    %223 = vset.pattern.permute.xlu0 0
    %224 = vperm.xlu0 %223, %v206
    %v225 = vpop.permute.xlu0 %224
    %v227 = vmul.f32 %v195, %v210
    %v228 = vmul.f32 %v196, %v210
    %v229 = vmul.f32 %v197, %v215
    %v230 = vmul.f32 %v198, %v215
    %v231 = vmul.f32 %v199, %v220
    %v232 = vmul.f32 %v200, %v220
    %v233 = vmul.f32 %v201, %v225
    %v234 = vmul.f32 %v202, %v225
    %v235 = vadd.f32 %v227, %v229
    %v236 = vadd.f32 %v235, %v231
    %v237 = vadd.f32 %v236, %v233
    %v238 = vrot.slane %v237, 4
    %v239 = vadd.f32 %v237, %v238
    %v240 = vrot.slane %v239, 2
    %v241 = vadd.f32 %v239, %v240
    %v242 = vrot.slane %v241, 1
    %v243 = vadd.f32 %v241, %v242
    %v244 = vadd.f32 %v228, %v230
    %v245 = vadd.f32 %v244, %v232
    %v246 = vadd.f32 %v245, %v234
    %v247 = vrot.slane %v246, 4
    %v248 = vadd.f32 %v246, %v247
    %v249 = vrot.slane %v248, 2
    %v250 = vadd.f32 %v248, %v249
    %v251 = vrot.slane %v250, 1
    %v252 = vadd.f32 %v250, %v251
    %s253 = sld [smem:[#allocation2]]
    %v254 = vstv %s253
    %v255 = vadd.f32 %v243, %v254
    %v256 = vadd.f32 %v252, %v254
    %v259 = vcombine.low %v255, %v256
    %v261 = vunpack.c.l.s4 1966171168
    %v262 = vunpack.c.0.s8 %v261
    %v263 = vlaneseq
    %v264 = vshrl.u32 %v263, 7
    %v265 = vsub.s32 %v262, %v264
    %v266 = vrot.slane %v259, %v265
    %v268 = vunpack.c.l.s4 1966171168
    %v269 = vunpack.c.0.s8 %v268
    %v270 = vlaneseq
    %v271 = vshrl.u32 %v270, 7
    %v272 = vsub.s32 %v269, %v271
    %v273 = vrot.slane %v266, %v272
    %v275 = vlaneseq
    %vm276 = vcmp.ge.s32.totalorder %v275, 0
    %vm277 = vcmp.lt.s32.totalorder %v275, 256
    %vm278 = vmand %vm276, %vm277
    %279 = vst.msk [vmem:[#allocation3] sm:$0x3] %vm278, %v273
    // Predicated region
    $region22: #{tpu_custom_call.1} parent=1 // pred_check
      _
    $region23: #{tpu_custom_call.1} parent=1 // pred_check_branch
      %281 = sbr.rel (0) target = $region25
    $region24: #{tpu_custom_call.1} parent=1 // pred_region
      %s283 = ssub.s32 32, 32
      %284 = vsyncadd [#allocation4], %s283
      %s286 = sshll.u32 [#allocation3], 4
      %s287 = int_to_ptr.vmem [resolvable:$true] %s286
      %289 = dma.vmem_to_hbm [thread:$0]  %s287, 32, %s5, [#allocation4]
    $region25: #{tpu_custom_call.1} parent=1 // pred_fallthru
      _
    // Predicated region
    $region26: #{tpu_custom_call.1} parent=1 // pred_check
      _
    $region27: #{tpu_custom_call.1} parent=1 // pred_check_branch
      %291 = sbr.rel (0) target = $region29
    $region28: #{tpu_custom_call.1} parent=1 // pred_region
      %292 = dma.done [#allocation4], 32
    $region29: #{tpu_custom_call.1} parent=1 // pred_fallthru
      _
    %293 = vsyncpa [#allocation4], 1

</llo_original>
